<compile_context>
chip_gen: v7x
topology: tpu7x:2x2x1
jax: 0.10.0
libtpu: 0.0.40
codegen_flags: <defaults>
</compile_context>

<pallas_src>
import math

import jax
import jax.numpy as jnp
from jax.experimental import pallas as pl
from jax.experimental.pallas import tpu as pltpu


def _round_up(x, m):
    return ((x + m - 1) // m) * m


# ---------------------------------------------------------------------------
# Kernel:  out[i-block] = cast_bf16(x[i-block]) @ W_eff + b_eff
# Weight, bias are VMEM-resident (constant index_map); no K tiling needed.
# ---------------------------------------------------------------------------
def _head_kernel(x_ref, w_ref, b_ref, o_ref):
    # x_ref: (bm, K) f32 activation tile (cast to bf16 in-kernel, on the VPU)
    # w_ref: (K, E)  bf16 folded weight (resident; fetched once)
    # b_ref: (1, E)  f32 folded bias
    # o_ref: (bm, E) f32 output tile
    x = x_ref[...].astype(w_ref.dtype)
    o_ref[...] = (jnp.dot(x, w_ref[...], preferred_element_type=jnp.float32)
                  + b_ref[...]).astype(o_ref.dtype)


# ---------------------------------------------------------------------------
# VMEM accounting helpers (conservative: counts both pipeline buffers).
# ---------------------------------------------------------------------------
def _head_vmem_bytes(bm, K, E):
    w = 2 * K * E * 2        # bf16 weight, double-buffered (conservative)
    a = 2 * bm * K * 4       # f32 activation tile, double-buffered
    o = 2 * bm * E * 4       # f32 output tile, double-buffered
    b = 2 * 1 * E * 4        # bias
    return w + a + o + b


def _vmem_budget_bytes():
    # Leave ~20 MiB headroom below the physical per-core VMEM; fall back to a
    # v7x-safe (64 MiB/TC) budget if the hardware query is unavailable.
    try:
        cap = pltpu.get_tpu_info().vmem_capacity_bytes
        return max(32 * 1024 * 1024, int(cap) - 20 * 1024 * 1024)
    except Exception:
        return 44 * 1024 * 1024


# ---------------------------------------------------------------------------
# Parameter prep: fold BN2d / BN1d / Linear bias into effective weight & bias.
# ---------------------------------------------------------------------------
def fold_head_params(raw, spatial_hw, eps=1e-5, compute_dtype=jnp.bfloat16):
    """Eval-mode fold of BN2d -> Linear -> BN1d into (W_eff, b_eff).

    raw: dict with
      w_t (K, E) Linear weight transposed to (in, out), bias (E,),
      bn2d_{gamma,beta,mean,var} (C,), bn1d_{gamma,beta,mean,var} (E,).
    spatial_hw: H*W of the feature map (25 for the 5x5 head).
    """
    w_t = raw["w_t"].astype(jnp.float32)              # (K, E)
    K, E = w_t.shape

    s2d_c = raw["bn2d_gamma"] / jnp.sqrt(raw["bn2d_var"] + eps)   # (C,)
    b2d_c = raw["bn2d_beta"] - raw["bn2d_mean"] * s2d_c
    # Repeat per-channel affine across H*W in NCHW flatten order -> (K,)
    s2d = jnp.repeat(s2d_c, spatial_hw)
    b2d = jnp.repeat(b2d_c, spatial_hw)

    s1d = raw["bn1d_gamma"] / jnp.sqrt(raw["bn1d_var"] + eps)     # (E,)
    b1d = raw["bn1d_beta"] - raw["bn1d_mean"] * s1d

    w_eff = (s2d[:, None] * w_t) * s1d[None, :]                   # (K, E)
    b_eff = s1d * (b2d @ w_t + raw["bias"]) + b1d                 # (E,)

    return dict(w_eff=w_eff.astype(compute_dtype),
                b_eff=b_eff.reshape(1, E).astype(jnp.float32))


# ---------------------------------------------------------------------------
# Wrapper: flatten (free reshape), pick bm, run the M-tiled pallas_call.
# ---------------------------------------------------------------------------
def visual_backbone_head(x_nchw, folded, *, block_m=512):
    """Runs the replaced output_layer head of VisualBackbone (eval mode).

    x_nchw: (N, C, H, W) float32 feature map entering output_layer.
    folded: output of fold_head_params.
    Returns: (N, E) float32 embedding.
    """
    N, C, H, W = x_nchw.shape
    w_eff = folded["w_eff"]          # (K, E) bf16, resident in VMEM
    b_eff = folded["b_eff"]          # (1, E) f32
    K, E = w_eff.shape
    assert C * H * W == K, "feature map does not match folded weight"

    # Flatten exactly like torch's .view(N, -1) on an NCHW tensor (row-major
    # reshape; no data movement).  No dtype cast here -- done in-kernel.
    x_flat = x_nchw.reshape(N, K)

    sub = 8  # f32 sublane granularity for the activation M dimension
    # At least 2 M-blocks when N > 16 so the "parallel" axis can feed both
    # v7x TensorCores; otherwise a single (rounded-up) block.
    if N > 16:
        bm = min(block_m, _round_up(-(-N // 2), sub))
    else:
        bm = min(block_m, _round_up(N, sub))
    bm = max(bm, sub)

    # Shrink bm until the conservative VMEM footprint fits the budget.
    budget = _vmem_budget_bytes()
    while bm > sub and _head_vmem_bytes(bm, K, E) > budget:
        bm = max(sub, _round_up(bm // 2, sub))

    vmem_limit = max(32 * 1024 * 1024,
                     _head_vmem_bytes(bm, K, E) + 8 * 1024 * 1024)

    grid = (pl.cdiv(N, bm),)

    out = pl.pallas_call(
        _head_kernel,
        out_shape=jax.ShapeDtypeStruct((N, E), jnp.float32),
        grid=grid,
        in_specs=[
            pl.BlockSpec((bm, K), lambda i: (i, 0)),   # activation M-tile (f32)
            pl.BlockSpec((K, E), lambda i: (0, 0)),    # resident folded weight
            pl.BlockSpec((1, E), lambda i: (0, 0)),    # folded bias
        ],
        out_specs=pl.BlockSpec((bm, E), lambda i: (i, 0)),
        compiler_params=pltpu.CompilerParams(
            dimension_semantics=("parallel",),
            vmem_limit_bytes=int(vmem_limit)),
    )(x_flat, w_eff, b_eff)

    return out


# ---------------------------------------------------------------------------
# Deterministic init matching the module's __init__ (raw, unfolded params).
# ---------------------------------------------------------------------------
def init_params(key, embedding_dim, spatial=5):
    """Linear: xavier_uniform_ weight, zero bias.  BN2d/BN1d: weight=1,
    bias=0, running_mean=0, running_var=1 (fresh modules)."""
    E = embedding_dim
    K = E * spatial * spatial

    # xavier_uniform_ on torch weight (E, K): bound = sqrt(6/(K+E)).
    bound = math.sqrt(6.0 / (K + E))
    w_torch = jax.random.uniform(key, (E, K), jnp.float32, -bound, bound)

    ones_c = jnp.ones((E,), jnp.float32)
    zeros_c = jnp.zeros((E,), jnp.float32)
    return dict(
        w_t=w_torch.T,                      # (K, E)
        bias=jnp.zeros((E,), jnp.float32),
        bn2d_gamma=ones_c, bn2d_beta=zeros_c,
        bn2d_mean=zeros_c, bn2d_var=ones_c,
        bn1d_gamma=ones_c, bn1d_beta=zeros_c,
        bn1d_mean=zeros_c, bn1d_var=ones_c,
    )


# ---------------------------------------------------------------------------
# Pure-JAX references.
# ---------------------------------------------------------------------------
def _reference_original(x_nchw, raw, eps=1e-5):
    """Unfolded f32 reference: BN2d -> Dropout(eval) -> Flatten -> Linear -> BN1d."""
    N = x_nchw.shape[0]
    s2d = raw["bn2d_gamma"] / jnp.sqrt(raw["bn2d_var"] + eps)
    b2d = raw["bn2d_beta"] - raw["bn2d_mean"] * s2d
    xn = x_nchw * s2d[None, :, None, None] + b2d[None, :, None, None]
    flat = xn.reshape(N, -1)
    y = flat @ raw["w_t"] + raw["bias"]
    s1d = raw["bn1d_gamma"] / jnp.sqrt(raw["bn1d_var"] + eps)
    b1d = raw["bn1d_beta"] - raw["bn1d_mean"] * s1d
    return y * s1d + b1d


def _reference_folded(x_nchw, folded):
    """Same folded bf16 compute as the kernel, via plain XLA (tight check)."""
    N = x_nchw.shape[0]
    K, E = folded["w_eff"].shape
    x = x_nchw.reshape(N, K).astype(folded["w_eff"].dtype)
    y = jnp.dot(x, folded["w_eff"], preferred_element_type=jnp.float32)
    return y + folded["b_eff"]


if __name__ == "__main__":
    # Small, shape-consistent example: embedding_dim=32 (in place of 512);
    # the 5x5 spatial size is fixed by Linear(embedding_dim * 5 * 5, ...).
    batch, embedding_dim, spatial = 2, 32, 5

    key = jax.random.PRNGKey(0)
    k_x, k_w, k_bn, k_x2 = jax.random.split(key, 4)

    x = jax.random.normal(k_x, (batch, embedding_dim, spatial, spatial),
                          jnp.float32)

    # --- test 1: faithful module init (BN weight=1, bias=0, fresh stats) ---
    raw = init_params(k_w, embedding_dim, spatial)
    folded = fold_head_params(raw, spatial * spatial)

    out = jax.block_until_ready(visual_backbone_head(x, folded))
    assert out.shape == (batch, embedding_dim)

    ref_tight = _reference_folded(x, folded)
    assert jnp.allclose(out, ref_tight, atol=1e-3, rtol=1e-3), \
        "kernel mismatch vs folded bf16 reference"

    ref_full = _reference_original(x, raw)
    assert jnp.allclose(out, ref_full, atol=5e-2, rtol=5e-2), \
        "kernel mismatch vs f32 module reference"

    # --- test 2: randomized BN params / stats to exercise the full fold ---
    kb = jax.random.split(k_bn, 8)
    E = embedding_dim
    raw2 = dict(raw)
    raw2.update(
        bn2d_gamma=jax.random.uniform(kb[0], (E,), jnp.float32, 0.5, 1.5),
        bn2d_beta=jax.random.uniform(kb[1], (E,), jnp.float32, -0.5, 0.5),
        bn2d_mean=jax.random.uniform(kb[2], (E,), jnp.float32, -0.5, 0.5),
        bn2d_var=jax.random.uniform(kb[3], (E,), jnp.float32, 0.5, 1.5),
        bn1d_gamma=jax.random.uniform(kb[4], (E,), jnp.float32, 0.5, 1.5),
        bn1d_beta=jax.random.uniform(kb[5], (E,), jnp.float32, -0.5, 0.5),
        bn1d_mean=jax.random.uniform(kb[6], (E,), jnp.float32, -0.5, 0.5),
        bn1d_var=jax.random.uniform(kb[7], (E,), jnp.float32, 0.5, 1.5),
        bias=jax.random.uniform(kb[0], (E,), jnp.float32, -0.1, 0.1),
    )
    folded2 = fold_head_params(raw2, spatial * spatial)
    out2 = jax.block_until_ready(visual_backbone_head(x, folded2))
    ref2 = _reference_original(x, raw2)
    assert jnp.allclose(out2, ref2, atol=5e-2, rtol=5e-2), \
        "kernel mismatch vs f32 reference (randomized BN fold)"

    # --- test 3: ragged multi-block grid (N not a multiple of bm) ----------
    x3 = jax.random.normal(k_x2, (10, embedding_dim, spatial, spatial),
                           jnp.float32)
    out3 = jax.block_until_ready(visual_backbone_head(x3, folded2, block_m=8))
    assert out3.shape == (10, embedding_dim)
    ref3 = _reference_original(x3, raw2)
    assert jnp.allclose(out3, ref3, atol=5e-2, rtol=5e-2), \
        "kernel mismatch on ragged multi-block grid"

    print("KERNEL_OK")
</pallas_src>

<mosaic_0001>
module attributes {stable_mosaic.version = 11 : i64} {
  func.func @_head_kernel(%arg0: i32, %arg1: memref<8x800xf32, #tpu.memory_space<vmem>>, %arg2: memref<800x32xbf16, #tpu.memory_space<vmem>>, %arg3: memref<1x32xf32, #tpu.memory_space<vmem>>, %arg4: memref<8x32xf32, #tpu.memory_space<vmem>>) attributes {dimension_semantics = [#tpu.dimension_semantics<parallel>], iteration_bounds = array<i64: 1>, scalar_prefetch = 0 : i64, scratch_operands = 0 : i64, tpu.core_type = #tpu.core_type<tc>, window_params = [{transform_indices = @transform_0, window_bounds = array<i64: 8, 800>}, {pipeline_mode = #tpu.pipeline_mode<synchronous>, transform_indices = @transform_1, window_bounds = array<i64: 800, 32>}, {pipeline_mode = #tpu.pipeline_mode<synchronous>, transform_indices = @transform_2, window_bounds = array<i64: 1, 32>}, {transform_indices = @transform_3, window_bounds = array<i64: 8, 32>}]} {
    %c0 = arith.constant 0 : index
    %c0_0 = arith.constant 0 : index
    %0 = vector.load %arg1[%c0, %c0_0] : memref<8x800xf32, #tpu.memory_space<vmem>>, vector<8x800xf32>
    %1 = arith.truncf %0 : vector<8x800xf32> to vector<8x800xbf16>
    %c0_1 = arith.constant 0 : index
    %c0_2 = arith.constant 0 : index
    %2 = vector.load %arg2[%c0_1, %c0_2] : memref<800x32xbf16, #tpu.memory_space<vmem>>, vector<800x32xbf16>
    %cst = arith.constant dense<0.000000e+00> : vector<8x32xf32>
    %3 = tpu.matmul %1, %2, %cst {dimension_numbers = #tpu.dot_dimension_numbers<[1], [0], [0], [1], [0, 0, 1, 1], [], []>} : vector<8x800xbf16>, vector<800x32xbf16>, vector<8x32xf32> -> vector<8x32xf32>
    %c0_3 = arith.constant 0 : index
    %c0_4 = arith.constant 0 : index
    %4 = vector.load %arg3[%c0_3, %c0_4] : memref<1x32xf32, #tpu.memory_space<vmem>>, vector<1x32xf32>
    %5 = vector.broadcast %4 : vector<1x32xf32> to vector<8x32xf32>
    %6 = arith.addf %3, %5 : vector<8x32xf32>
    %c0_5 = arith.constant 0 : index
    %c0_6 = arith.constant 0 : index
    %7 = vector.load %arg4[%c0_5, %c0_6] : memref<8x32xf32, #tpu.memory_space<vmem>>, vector<8x32xf32>
    tpu.vector_store %arg4[%c0_5, %c0_6], %6 {strides = array<i32>} : memref<8x32xf32, #tpu.memory_space<vmem>>, vector<8x32xf32>,
    return
  }
  func.func @transform_0(%arg0: i32) -> (i32, i32) {
    %c0_i32 = arith.constant 0 : i32
    %c0_i32_0 = arith.constant 0 : i32
    return %arg0, %c0_i32 : i32, i32
  }
  func.func @transform_1(%arg0: i32) -> (i32, i32) {
    %c0_i32 = arith.constant 0 : i32
    %c0_i32_0 = arith.constant 0 : i32
    %c0_i32_1 = arith.constant 0 : i32
    return %c0_i32, %c0_i32_0 : i32, i32
  }
  func.func @transform_2(%arg0: i32) -> (i32, i32) {
    %c0_i32 = arith.constant 0 : i32
    %c0_i32_0 = arith.constant 0 : i32
    %c0_i32_1 = arith.constant 0 : i32
    return %c0_i32, %c0_i32_0 : i32, i32
  }
  func.func @transform_3(%arg0: i32) -> (i32, i32) {
    %c0_i32 = arith.constant 0 : i32
    %c0_i32_0 = arith.constant 0 : i32
    return %arg0, %c0_i32 : i32, i32
  }
}

</mosaic_0001>

<llo_original>
// kernel: tpu_custom_call.1
$region0: #{tpu_custom_call.1}
  #allocation0 [shape = 'u32[]', space=smem, size = 0x4, offset = 0x4, fixed_abs, tag = 'smem constant byte address 0x4 - core index']
  #allocation1 [shape = 'u32[144,128]{1,0:T(1,128)}', space=vmem, size = 0x12000, scoped, tag = 'internal scratch']
  %s0 = inlined_call_operand.vmem [shape: f32[2,800], index: 0, kind: input, shape index: {}]
  %s1 = inlined_call_operand.vmem [shape: bf16[800,32], index: 1, kind: input, shape index: {}]
  %s2 = inlined_call_operand.vmem [shape: f32[1,32], index: 2, kind: input, shape index: {}]
  %s3 = inlined_call_operand.hbm [shape: f32[2,32], index: 3, kind: output, shape index: {}]
  %s4 = sld [smem:[#allocation0]]
  $region22: #{tpu_custom_call.1} parent=0
    _
  %s6 = ssub.s32 1, %s4
  %s7 = scalar_select 0, %s6, %s4
  $region1: #{tpu_custom_call.1} parent=0
    #allocation2 [shape = 'u8[4096]{0}', space=vmem, size = 0x1000, scoped, tag = 'output window, operand 0, single buffered']
    #allocation3 [shape = 's32[1]{0}', space=sflag, size = 0x4, scoped, tag = 'scoped memory for tpu_custom_call.1']
    %8 = vsyncpa [#allocation3], 0
    // Predicated region
    $region2: #{tpu_custom_call.1} parent=1 // pred_check
      _
    $region3: #{tpu_custom_call.1} parent=1 // pred_check_branch
      %10 = sbr.rel (0) target = $region5
    $region4: #{tpu_custom_call.1} parent=1 // pred_region
      _
    $region5: #{tpu_custom_call.1} parent=1 // pred_fallthru
      _
    // Predicated region
    $region6: #{tpu_custom_call.1} parent=1 // pred_check
      _
    $region7: #{tpu_custom_call.1} parent=1 // pred_check_branch
      %12 = sbr.rel (0) target = $region9
    $region8: #{tpu_custom_call.1} parent=1 // pred_region
      _
    $region9: #{tpu_custom_call.1} parent=1 // pred_fallthru
      _
    // Predicated region
    $region10: #{tpu_custom_call.1} parent=1 // pred_check
      _
    $region11: #{tpu_custom_call.1} parent=1 // pred_check_branch
      %14 = sbr.rel (0) target = $region13
    $region12: #{tpu_custom_call.1} parent=1 // pred_region
      _
    $region13: #{tpu_custom_call.1} parent=1 // pred_fallthru
      _
    %v16 = vld [vmem:[%s0] sm:$0xff]
    %v17 = vld [vmem:[%s0 + $0x8] sm:$0x3f]
    %v18 = vld [vmem:[%s0 + $0xe] sm:$0xff]
    %v19 = vld [vmem:[%s0 + $0x16] sm:$0x3f]
    %v20 = vld [vmem:[%s0 + $0x1c] sm:$0xff]
    %v21 = vld [vmem:[%s0 + $0x24] sm:$0x3f]
    %v22 = vld [vmem:[%s0 + $0x2a] sm:$0xff]
    %v23 = vld [vmem:[%s0 + $0x32] sm:$0x3f]
    %v32 = vcombine.low %v16, %v18
    %v33 = vcombine.high %v16, %v18
    %v34 = vcombine.low %v20, %v22
    %v35 = vcombine.high %v20, %v22
    %v37 = vunpack.c.l.s4 1983009808
    %v38 = vunpack.c.0.s8 %v37
    %v39 = vlaneseq
    %v40 = vshrl.u32 %v39, 7
    %v41 = vsub.s32 %v38, %v40
    %v42 = vrot.slane %v32, %v41
    %v44 = vunpack.c.l.s4 1983009808
    %v45 = vunpack.c.0.s8 %v44
    %v46 = vlaneseq
    %v47 = vshrl.u32 %v46, 7
    %v48 = vsub.s32 %v45, %v47
    %v49 = vrot.slane %v33, %v48
    %v51 = vunpack.c.l.s4 1983009808
    %v52 = vunpack.c.0.s8 %v51
    %v53 = vlaneseq
    %v54 = vshrl.u32 %v53, 7
    %v55 = vsub.s32 %v52, %v54
    %v56 = vrot.slane %v34, %v55
    %v58 = vunpack.c.l.s4 1983009808
    %v59 = vunpack.c.0.s8 %v58
    %v60 = vlaneseq
    %v61 = vshrl.u32 %v60, 7
    %v62 = vsub.s32 %v59, %v61
    %v63 = vrot.slane %v35, %v62
    %v64 = vcombine.low %v42, %v56
    %v65 = vcombine.high %v42, %v56
    %v66 = vcombine.low %v49, %v63
    %v67 = vcombine.high %v49, %v63
    %v68 = vcombine.low %v17, %v19
    %v69 = vcombine.high %v17, %v19
    %v70 = vcombine.low %v21, %v23
    %v71 = vcombine.high %v21, %v23
    %v73 = vunpack.c.l.s4 1983009808
    %v74 = vunpack.c.0.s8 %v73
    %v75 = vlaneseq
    %v76 = vshrl.u32 %v75, 7
    %v77 = vsub.s32 %v74, %v76
    %v78 = vrot.slane %v68, %v77
    %v80 = vunpack.c.l.s4 1983009808
    %v81 = vunpack.c.0.s8 %v80
    %v82 = vlaneseq
    %v83 = vshrl.u32 %v82, 7
    %v84 = vsub.s32 %v81, %v83
    %v85 = vrot.slane %v69, %v84
    %v87 = vunpack.c.l.s4 1983009808
    %v88 = vunpack.c.0.s8 %v87
    %v89 = vlaneseq
    %v90 = vshrl.u32 %v89, 7
    %v91 = vsub.s32 %v88, %v90
    %v92 = vrot.slane %v70, %v91
    %v94 = vunpack.c.l.s4 1983009808
    %v95 = vunpack.c.0.s8 %v94
    %v96 = vlaneseq
    %v97 = vshrl.u32 %v96, 7
    %v98 = vsub.s32 %v95, %v97
    %v99 = vrot.slane %v71, %v98
    %v100 = vcombine.low %v78, %v92
    %v101 = vcombine.high %v78, %v92
    %v102 = vcombine.low %v85, %v99
    %v110 = vpack.c.bf16 %v64, %v64
    %v111 = vpack.c.bf16 %v65, %v65
    %v112 = vpack.c.bf16 %v66, %v66
    %v113 = vpack.c.bf16 %v67, %v67
    %v114 = vpack.c.bf16 %v100, %v100
    %v115 = vpack.c.bf16 %v101, %v101
    %v116 = vpack.c.bf16 %v102, %v102
    %v117 = vld [vmem:[%s1] sm:$0xf]
    %v118 = vld [vmem:[%s1 + $0x4] sm:$0xf]
    %v119 = vld [vmem:[%s1 + $0x8] sm:$0xf]
    %v120 = vld [vmem:[%s1 + $0xc] sm:$0xf]
    %v121 = vld [vmem:[%s1 + $0x10] sm:$0xf]
    %v122 = vld [vmem:[%s1 + $0x14] sm:$0xf]
    %v123 = vld [vmem:[%s1 + $0x18] sm:$0xf]
    %v124 = vld [vmem:[%s1 + $0x1c] sm:$0xf]
    %v125 = vld [vmem:[%s1 + $0x20] sm:$0xf]
    %v126 = vld [vmem:[%s1 + $0x24] sm:$0xf]
    %v127 = vld [vmem:[%s1 + $0x28] sm:$0xf]
    %v128 = vld [vmem:[%s1 + $0x2c] sm:$0xf]
    %v129 = vld [vmem:[%s1 + $0x30] sm:$0xf]
    %v130 = vld [vmem:[%s1 + $0x34] sm:$0xf]
    %v131 = vld [vmem:[%s1 + $0x38] sm:$0xf]
    %v132 = vld [vmem:[%s1 + $0x3c] sm:$0xf]
    %v133 = vld [vmem:[%s1 + $0x40] sm:$0xf]
    %v134 = vld [vmem:[%s1 + $0x44] sm:$0xf]
    %v135 = vld [vmem:[%s1 + $0x48] sm:$0xf]
    %v136 = vld [vmem:[%s1 + $0x4c] sm:$0xf]
    %v137 = vld [vmem:[%s1 + $0x50] sm:$0xf]
    %v138 = vld [vmem:[%s1 + $0x54] sm:$0xf]
    %v139 = vld [vmem:[%s1 + $0x58] sm:$0xf]
    %v140 = vld [vmem:[%s1 + $0x5c] sm:$0xf]
    %v141 = vld [vmem:[%s1 + $0x60] sm:$0xf]
    %v142 = vld [vmem:[%s1 + $0x64] sm:$0xf]
    %v143 = vld [vmem:[%s1 + $0x68] sm:$0xf]
    %v144 = vld [vmem:[%s1 + $0x6c] sm:$0xf]
    %v145 = vld [vmem:[%s1 + $0x70] sm:$0xf]
    %v146 = vld [vmem:[%s1 + $0x74] sm:$0xf]
    %v147 = vld [vmem:[%s1 + $0x78] sm:$0xf]
    %v148 = vld [vmem:[%s1 + $0x7c] sm:$0xf]
    %v149 = vld [vmem:[%s1 + $0x80] sm:$0xf]
    %v150 = vld [vmem:[%s1 + $0x84] sm:$0xf]
    %v151 = vld [vmem:[%s1 + $0x88] sm:$0xf]
    %v152 = vld [vmem:[%s1 + $0x8c] sm:$0xf]
    %v153 = vld [vmem:[%s1 + $0x90] sm:$0xf]
    %v154 = vld [vmem:[%s1 + $0x94] sm:$0xf]
    %v155 = vld [vmem:[%s1 + $0x98] sm:$0xf]
    %v156 = vld [vmem:[%s1 + $0x9c] sm:$0xf]
    %v157 = vld [vmem:[%s1 + $0xa0] sm:$0xf]
    %v158 = vld [vmem:[%s1 + $0xa4] sm:$0xf]
    %v159 = vld [vmem:[%s1 + $0xa8] sm:$0xf]
    %v160 = vld [vmem:[%s1 + $0xac] sm:$0xf]
    %v161 = vld [vmem:[%s1 + $0xb0] sm:$0xf]
    %v162 = vld [vmem:[%s1 + $0xb4] sm:$0xf]
    %v163 = vld [vmem:[%s1 + $0xb8] sm:$0xf]
    %v164 = vld [vmem:[%s1 + $0xbc] sm:$0xf]
    %v165 = vld [vmem:[%s1 + $0xc0] sm:$0xf]
    %v166 = vld [vmem:[%s1 + $0xc4] sm:$0xf]
    %v167 = vld [vmem:[%s1 + $0xc8] sm:$0xf]
    %v168 = vld [vmem:[%s1 + $0xcc] sm:$0xf]
    %v169 = vld [vmem:[%s1 + $0xd0] sm:$0xf]
    %v170 = vld [vmem:[%s1 + $0xd4] sm:$0xf]
    %v171 = vld [vmem:[%s1 + $0xd8] sm:$0xf]
    %v172 = vld [vmem:[%s1 + $0xdc] sm:$0xf]
    %v173 = vld [vmem:[%s1 + $0xe0] sm:$0xf]
    %v174 = vld [vmem:[%s1 + $0xe4] sm:$0xf]
    %v175 = vld [vmem:[%s1 + $0xe8] sm:$0xf]
    %v176 = vld [vmem:[%s1 + $0xec] sm:$0xf]
    %v177 = vld [vmem:[%s1 + $0xf0] sm:$0xf]
    %v178 = vld [vmem:[%s1 + $0xf4] sm:$0xf]
    %v179 = vld [vmem:[%s1 + $0xf8] sm:$0xf]
    %v180 = vld [vmem:[%s1 + $0xfc] sm:$0xf]
    %v181 = vld [vmem:[%s1 + $0x100] sm:$0xf]
    %v182 = vld [vmem:[%s1 + $0x104] sm:$0xf]
    %v183 = vld [vmem:[%s1 + $0x108] sm:$0xf]
    %v184 = vld [vmem:[%s1 + $0x10c] sm:$0xf]
    %v185 = vld [vmem:[%s1 + $0x110] sm:$0xf]
    %v186 = vld [vmem:[%s1 + $0x114] sm:$0xf]
    %v187 = vld [vmem:[%s1 + $0x118] sm:$0xf]
    %v188 = vld [vmem:[%s1 + $0x11c] sm:$0xf]
    %v189 = vld [vmem:[%s1 + $0x120] sm:$0xf]
    %v190 = vld [vmem:[%s1 + $0x124] sm:$0xf]
    %v191 = vld [vmem:[%s1 + $0x128] sm:$0xf]
    %v192 = vld [vmem:[%s1 + $0x12c] sm:$0xf]
    %v193 = vld [vmem:[%s1 + $0x130] sm:$0xf]
    %v194 = vld [vmem:[%s1 + $0x134] sm:$0xf]
    %v195 = vld [vmem:[%s1 + $0x138] sm:$0xf]
    %v196 = vld [vmem:[%s1 + $0x13c] sm:$0xf]
    %v197 = vld [vmem:[%s1 + $0x140] sm:$0xf]
    %v198 = vld [vmem:[%s1 + $0x144] sm:$0xf]
    %v199 = vld [vmem:[%s1 + $0x148] sm:$0xf]
    %v200 = vld [vmem:[%s1 + $0x14c] sm:$0xf]
    %v201 = vld [vmem:[%s1 + $0x150] sm:$0xf]
    %v202 = vld [vmem:[%s1 + $0x154] sm:$0xf]
    %v203 = vld [vmem:[%s1 + $0x158] sm:$0xf]
    %v204 = vld [vmem:[%s1 + $0x15c] sm:$0xf]
    %v205 = vld [vmem:[%s1 + $0x160] sm:$0xf]
    %v206 = vld [vmem:[%s1 + $0x164] sm:$0xf]
    %v207 = vld [vmem:[%s1 + $0x168] sm:$0xf]
    %v208 = vld [vmem:[%s1 + $0x16c] sm:$0xf]
    %v209 = vld [vmem:[%s1 + $0x170] sm:$0xf]
    %v210 = vld [vmem:[%s1 + $0x174] sm:$0xf]
    %v211 = vld [vmem:[%s1 + $0x178] sm:$0xf]
    %v212 = vld [vmem:[%s1 + $0x17c] sm:$0xf]
    %v213 = vld [vmem:[%s1 + $0x180] sm:$0xf]
    %v214 = vld [vmem:[%s1 + $0x184] sm:$0xf]
    %v215 = vld [vmem:[%s1 + $0x188] sm:$0xf]
    %v216 = vld [vmem:[%s1 + $0x18c] sm:$0xf]
    %v217 = vld [vmem:[%s2] sm:$0x1]
    %v219 = vlaneseq
    %v220 = vshrl.u32 %v219, 7
    %v221 = vsub.s32 0, %v220
    %v222 = vrot.slane %v217, %v221
    %v324 = vunpack.c.l.b16 %v117
    %v325 = vunpack.c.l.b16 %v118
    %v326 = vunpack.c.l.b16 %v119
    %v327 = vunpack.c.l.b16 %v120
    %v328 = vunpack.c.l.b16 %v121
    %v329 = vunpack.c.l.b16 %v122
    %v330 = vunpack.c.l.b16 %v123
    %v331 = vunpack.c.l.b16 %v124
    %v332 = vunpack.c.l.b16 %v125
    %v333 = vunpack.c.l.b16 %v126
    %v334 = vunpack.c.l.b16 %v127
    %v335 = vunpack.c.l.b16 %v128
    %v336 = vunpack.c.l.b16 %v129
    %v337 = vunpack.c.l.b16 %v130
    %v338 = vunpack.c.l.b16 %v131
    %v339 = vunpack.c.l.b16 %v132
    %v340 = vunpack.c.l.b16 %v133
    %v341 = vunpack.c.l.b16 %v134
    %v342 = vunpack.c.l.b16 %v135
    %v343 = vunpack.c.l.b16 %v136
    %v344 = vunpack.c.l.b16 %v137
    %v345 = vunpack.c.l.b16 %v138
    %v346 = vunpack.c.l.b16 %v139
    %v347 = vunpack.c.l.b16 %v140
    %v348 = vunpack.c.l.b16 %v141
    %v349 = vunpack.c.l.b16 %v142
    %v350 = vunpack.c.l.b16 %v143
    %v351 = vunpack.c.l.b16 %v144
    %v352 = vunpack.c.l.b16 %v145
    %v353 = vunpack.c.l.b16 %v146
    %v354 = vunpack.c.l.b16 %v147
    %v355 = vunpack.c.l.b16 %v148
    %v356 = vunpack.c.l.b16 %v149
    %v357 = vunpack.c.l.b16 %v150
    %v358 = vunpack.c.l.b16 %v151
    %v359 = vunpack.c.l.b16 %v152
    %v360 = vunpack.c.l.b16 %v153
    %v361 = vunpack.c.l.b16 %v154
    %v362 = vunpack.c.l.b16 %v155
    %v363 = vunpack.c.l.b16 %v156
    %v364 = vunpack.c.l.b16 %v157
    %v365 = vunpack.c.l.b16 %v158
    %v366 = vunpack.c.l.b16 %v159
    %v367 = vunpack.c.l.b16 %v160
    %v368 = vunpack.c.l.b16 %v161
    %v369 = vunpack.c.l.b16 %v162
    %v370 = vunpack.c.l.b16 %v163
    %v371 = vunpack.c.l.b16 %v164
    %v372 = vunpack.c.l.b16 %v165
    %v373 = vunpack.c.l.b16 %v166
    %v374 = vunpack.c.l.b16 %v167
    %v375 = vunpack.c.l.b16 %v168
    %v376 = vunpack.c.l.b16 %v169
    %v377 = vunpack.c.l.b16 %v170
    %v378 = vunpack.c.l.b16 %v171
    %v379 = vunpack.c.l.b16 %v172
    %v380 = vunpack.c.l.b16 %v173
    %v381 = vunpack.c.l.b16 %v174
    %v382 = vunpack.c.l.b16 %v175
    %v383 = vunpack.c.l.b16 %v176
    %v384 = vunpack.c.l.b16 %v177
    %v385 = vunpack.c.l.b16 %v178
    %v386 = vunpack.c.l.b16 %v179
    %v387 = vunpack.c.l.b16 %v180
    %v388 = vunpack.c.l.b16 %v181
    %v389 = vunpack.c.l.b16 %v182
    %v390 = vunpack.c.l.b16 %v183
    %v391 = vunpack.c.l.b16 %v184
    %v392 = vunpack.c.l.b16 %v185
    %v393 = vunpack.c.l.b16 %v186
    %v394 = vunpack.c.l.b16 %v187
    %v395 = vunpack.c.l.b16 %v188
    %v396 = vunpack.c.l.b16 %v189
    %v397 = vunpack.c.l.b16 %v190
    %v398 = vunpack.c.l.b16 %v191
    %v399 = vunpack.c.l.b16 %v192
    %v400 = vunpack.c.l.b16 %v193
    %v401 = vunpack.c.l.b16 %v194
    %v402 = vunpack.c.l.b16 %v195
    %v403 = vunpack.c.l.b16 %v196
    %v404 = vunpack.c.l.b16 %v197
    %v405 = vunpack.c.l.b16 %v198
    %v406 = vunpack.c.l.b16 %v199
    %v407 = vunpack.c.l.b16 %v200
    %v408 = vunpack.c.l.b16 %v201
    %v409 = vunpack.c.l.b16 %v202
    %v410 = vunpack.c.l.b16 %v203
    %v411 = vunpack.c.l.b16 %v204
    %v412 = vunpack.c.l.b16 %v205
    %v413 = vunpack.c.l.b16 %v206
    %v414 = vunpack.c.l.b16 %v207
    %v415 = vunpack.c.l.b16 %v208
    %v416 = vunpack.c.l.b16 %v209
    %v417 = vunpack.c.l.b16 %v210
    %v418 = vunpack.c.l.b16 %v211
    %v419 = vunpack.c.l.b16 %v212
    %v420 = vunpack.c.l.b16 %v213
    %v421 = vunpack.c.l.b16 %v214
    %v422 = vunpack.c.l.b16 %v215
    %v423 = vunpack.c.l.b16 %v216
    %v424 = vpack.c.b16 %v325, %v324
    %v425 = vpack.c.b16 %v327, %v326
    %v426 = vpack.c.b16 %v329, %v328
    %v427 = vpack.c.b16 %v331, %v330
    %v428 = vpack.c.b16 %v333, %v332
    %v429 = vpack.c.b16 %v335, %v334
    %v430 = vpack.c.b16 %v337, %v336
    %v431 = vpack.c.b16 %v339, %v338
    %v432 = vpack.c.b16 %v341, %v340
    %v433 = vpack.c.b16 %v343, %v342
    %v434 = vpack.c.b16 %v345, %v344
    %v435 = vpack.c.b16 %v347, %v346
    %v436 = vpack.c.b16 %v349, %v348
    %v437 = vpack.c.b16 %v351, %v350
    %v438 = vpack.c.b16 %v353, %v352
    %v439 = vpack.c.b16 %v355, %v354
    %v440 = vpack.c.b16 %v357, %v356
    %v441 = vpack.c.b16 %v359, %v358
    %v442 = vpack.c.b16 %v361, %v360
    %v443 = vpack.c.b16 %v363, %v362
    %v444 = vpack.c.b16 %v365, %v364
    %v445 = vpack.c.b16 %v367, %v366
    %v446 = vpack.c.b16 %v369, %v368
    %v447 = vpack.c.b16 %v371, %v370
    %v448 = vpack.c.b16 %v373, %v372
    %v449 = vpack.c.b16 %v375, %v374
    %v450 = vpack.c.b16 %v377, %v376
    %v451 = vpack.c.b16 %v379, %v378
    %v452 = vpack.c.b16 %v381, %v380
    %v453 = vpack.c.b16 %v383, %v382
    %v454 = vpack.c.b16 %v385, %v384
    %v455 = vpack.c.b16 %v387, %v386
    %v456 = vpack.c.b16 %v389, %v388
    %v457 = vpack.c.b16 %v391, %v390
    %v458 = vpack.c.b16 %v393, %v392
    %v459 = vpack.c.b16 %v395, %v394
    %v460 = vpack.c.b16 %v397, %v396
    %v461 = vpack.c.b16 %v399, %v398
    %v462 = vpack.c.b16 %v401, %v400
    %v463 = vpack.c.b16 %v403, %v402
    %v464 = vpack.c.b16 %v405, %v404
    %v465 = vpack.c.b16 %v407, %v406
    %v466 = vpack.c.b16 %v409, %v408
    %v467 = vpack.c.b16 %v411, %v410
    %v468 = vpack.c.b16 %v413, %v412
    %v469 = vpack.c.b16 %v415, %v414
    %v470 = vpack.c.b16 %v417, %v416
    %v471 = vpack.c.b16 %v419, %v418
    %v472 = vpack.c.b16 %v421, %v420
    %v473 = vpack.c.b16 %v423, %v422
    %vm524 = vcmask 261120
    %v526 = vsel %vm524, %v116, 0
    %528 = vmatprep.subr.bf16.mxu0 0
    %529 = vmatpush1.bf16.msra.mxu0 %v424
    %530 = vmatprep.subr.bf16.mxu0 0
    %531 = vmatpush1.bf16.msra.mxu0 %v425
    %532 = vmatprep.subr.bf16.mxu0 0
    %533 = vmatpush1.bf16.msra.mxu0 %v426
    %534 = vmatprep.subr.bf16.mxu0 0
    %535 = vmatpush1.bf16.msra.mxu0 %v427
    %536 = vmatprep.subr.bf16.mxu0 0
    %537 = vmatpush1.bf16.msra.mxu0 %v428
    %538 = vmatprep.subr.bf16.mxu0 0
    %539 = vmatpush1.bf16.msra.mxu0 %v429
    %540 = vmatprep.subr.bf16.mxu0 0
    %541 = vmatpush1.bf16.msra.mxu0 %v430
    %542 = vmatprep.subr.bf16.mxu0 0
    %543 = vmatpush1.bf16.msra.mxu0 %v431
    %544 = vmatprep.subr.bf16.mxu0 0
    %545 = vmatpush1.bf16.msra.mxu0 %v432
    %546 = vmatprep.subr.bf16.mxu0 0
    %547 = vmatpush1.bf16.msra.mxu0 %v433
    %548 = vmatprep.subr.bf16.mxu0 0
    %549 = vmatpush1.bf16.msra.mxu0 %v434
    %550 = vmatprep.subr.bf16.mxu0 0
    %551 = vmatpush1.bf16.msra.mxu0 %v435
    %552 = vmatprep.subr.bf16.mxu0 0
    %553 = vmatpush1.bf16.msra.mxu0 %v436
    %554 = vmatprep.subr.bf16.mxu0 0
    %555 = vmatpush1.bf16.msra.mxu0 %v437
    %556 = vmatprep.subr.bf16.mxu0 0
    %557 = vmatpush1.bf16.msra.mxu0 %v438
    %558 = vmatprep.subr.bf16.mxu0 0
    %559 = vmatpush1.bf16.msra.mxu0 %v439
    %560 = vmatprep.mubr.bf16.mxu0 %v111
    %561 = vmatmul.mubr.bf16.gmra.mrb[0].mxu0 %v110
    %v562 = vpop.f32.mrb[0].mxu0
    %v563 = vadd.f32 %v222, %v562
    %v564 = vpop.f32.mrb[0].mxu0
    %v565 = vpop.f32.mrb[0].mxu0
    %v566 = vpop.f32.mrb[0].mxu0
    %567 = vdwg.mxu0
    %568 = vmatprep.subr.bf16.mxu0 0
    %569 = vmatpush1.bf16.msra.mxu0 %v440
    %570 = vmatprep.subr.bf16.mxu0 0
    %571 = vmatpush1.bf16.msra.mxu0 %v441
    %572 = vmatprep.subr.bf16.mxu0 0
    %573 = vmatpush1.bf16.msra.mxu0 %v442
    %574 = vmatprep.subr.bf16.mxu0 0
    %575 = vmatpush1.bf16.msra.mxu0 %v443
    %576 = vmatprep.subr.bf16.mxu0 0
    %577 = vmatpush1.bf16.msra.mxu0 %v444
    %578 = vmatprep.subr.bf16.mxu0 0
    %579 = vmatpush1.bf16.msra.mxu0 %v445
    %580 = vmatprep.subr.bf16.mxu0 0
    %581 = vmatpush1.bf16.msra.mxu0 %v446
    %582 = vmatprep.subr.bf16.mxu0 0
    %583 = vmatpush1.bf16.msra.mxu0 %v447
    %584 = vmatprep.subr.bf16.mxu0 0
    %585 = vmatpush1.bf16.msra.mxu0 %v448
    %586 = vmatprep.subr.bf16.mxu0 0
    %587 = vmatpush1.bf16.msra.mxu0 %v449
    %588 = vmatprep.subr.bf16.mxu0 0
    %589 = vmatpush1.bf16.msra.mxu0 %v450
    %590 = vmatprep.subr.bf16.mxu0 0
    %591 = vmatpush1.bf16.msra.mxu0 %v451
    %592 = vmatprep.subr.bf16.mxu0 0
    %593 = vmatpush1.bf16.msra.mxu0 %v452
    %594 = vmatprep.subr.bf16.mxu0 0
    %595 = vmatpush1.bf16.msra.mxu0 %v453
    %596 = vmatprep.subr.bf16.mxu0 0
    %597 = vmatpush1.bf16.msra.mxu0 %v454
    %598 = vmatprep.subr.bf16.mxu0 0
    %599 = vmatpush1.bf16.msra.mxu0 %v455
    %600 = vmatprep.mubr.bf16.mxu0 %v113
    %601 = vmatmul.mubr.bf16.gmra.mrb[0].mxu0 %v112
    %v602 = vpop.f32.mrb[0].mxu0
    %v603 = vadd.f32 %v563, %v602
    %v604 = vpop.f32.mrb[0].mxu0
    %v605 = vpop.f32.mrb[0].mxu0
    %v606 = vpop.f32.mrb[0].mxu0
    %607 = vdwg.mxu0
    %608 = vmatprep.subr.bf16.mxu0 0
    %609 = vmatpush1.bf16.msra.mxu0 %v456
    %610 = vmatprep.subr.bf16.mxu0 0
    %611 = vmatpush1.bf16.msra.mxu0 %v457
    %612 = vmatprep.subr.bf16.mxu0 0
    %613 = vmatpush1.bf16.msra.mxu0 %v458
    %614 = vmatprep.subr.bf16.mxu0 0
    %615 = vmatpush1.bf16.msra.mxu0 %v459
    %616 = vmatprep.subr.bf16.mxu0 0
    %617 = vmatpush1.bf16.msra.mxu0 %v460
    %618 = vmatprep.subr.bf16.mxu0 0
    %619 = vmatpush1.bf16.msra.mxu0 %v461
    %620 = vmatprep.subr.bf16.mxu0 0
    %621 = vmatpush1.bf16.msra.mxu0 %v462
    %622 = vmatprep.subr.bf16.mxu0 0
    %623 = vmatpush1.bf16.msra.mxu0 %v463
    %624 = vmatprep.subr.bf16.mxu0 0
    %625 = vmatpush1.bf16.msra.mxu0 %v464
    %626 = vmatprep.subr.bf16.mxu0 0
    %627 = vmatpush1.bf16.msra.mxu0 %v465
    %628 = vmatprep.subr.bf16.mxu0 0
    %629 = vmatpush1.bf16.msra.mxu0 %v466
    %630 = vmatprep.subr.bf16.mxu0 0
    %631 = vmatpush1.bf16.msra.mxu0 %v467
    %632 = vmatprep.subr.bf16.mxu0 0
    %633 = vmatpush1.bf16.msra.mxu0 %v468
    %634 = vmatprep.subr.bf16.mxu0 0
    %635 = vmatpush1.bf16.msra.mxu0 %v469
    %636 = vmatprep.subr.bf16.mxu0 0
    %637 = vmatpush1.bf16.msra.mxu0 %v470
    %638 = vmatprep.subr.bf16.mxu0 0
    %639 = vmatpush1.bf16.msra.mxu0 %v471
    %640 = vmatprep.mubr.bf16.mxu0 %v115
    %641 = vmatmul.mubr.bf16.gmra.mrb[0].mxu0 %v114
    %v642 = vpop.f32.mrb[0].mxu0
    %v643 = vadd.f32 %v603, %v642
    %v644 = vpop.f32.mrb[0].mxu0
    %v645 = vpop.f32.mrb[0].mxu0
    %v646 = vpop.f32.mrb[0].mxu0
    %647 = vdwg.mxu0
    %648 = vmatprep.subr.bf16.mxu0 0
    %649 = vmatpush1.bf16.msra.mxu0 %v472
    %650 = vmatprep.subr.bf16.mxu0 0
    %651 = vmatpush1.bf16.msra.mxu0 %v473
    %652 = vmatprep.subr.bf16.mxu0 0
    %653 = vmatpush1.bf16.msra.mxu0 0
    %654 = vmatprep.subr.bf16.mxu0 0
    %655 = vmatpush1.bf16.msra.mxu0 0
    %656 = vmatprep.subr.bf16.mxu0 0
    %657 = vmatpush1.bf16.msra.mxu0 0
    %658 = vmatprep.subr.bf16.mxu0 0
    %659 = vmatpush1.bf16.msra.mxu0 0
    %660 = vmatprep.subr.bf16.mxu0 0
    %661 = vmatpush1.bf16.msra.mxu0 0
    %662 = vmatprep.subr.bf16.mxu0 0
    %663 = vmatpush1.bf16.msra.mxu0 0
    %664 = vmatprep.subr.bf16.mxu0 0
    %665 = vmatpush1.bf16.msra.mxu0 0
    %666 = vmatprep.subr.bf16.mxu0 0
    %667 = vmatpush1.bf16.msra.mxu0 0
    %668 = vmatprep.subr.bf16.mxu0 0
    %669 = vmatpush1.bf16.msra.mxu0 0
    %670 = vmatprep.subr.bf16.mxu0 0
    %671 = vmatpush1.bf16.msra.mxu0 0
    %672 = vmatprep.subr.bf16.mxu0 0
    %673 = vmatpush1.bf16.msra.mxu0 0
    %674 = vmatprep.subr.bf16.mxu0 0
    %675 = vmatpush1.bf16.msra.mxu0 0
    %676 = vmatprep.subr.bf16.mxu0 0
    %677 = vmatpush1.bf16.msra.mxu0 0
    %678 = vmatprep.subr.bf16.mxu0 0
    %679 = vmatpush1.bf16.msra.mxu0 0
    %680 = vmatprep.mubr.bf16.mxu0 0
    %681 = vmatmul.mubr.bf16.gmra.mrb[0].mxu0 %v526
    %v682 = vpop.f32.mrb[0].mxu0
    %v683 = vadd.f32 %v643, %v682
    %v684 = vpop.f32.mrb[0].mxu0
    %v685 = vpop.f32.mrb[0].mxu0
    %v686 = vpop.f32.mrb[0].mxu0
    %687 = vdwg.mxu0
    %688 = vst.msk [vmem:[#allocation2] sm:$0xff] %vm524, %v683
    // Predicated region
    $region14: #{tpu_custom_call.1} parent=1 // pred_check
      _
    $region15: #{tpu_custom_call.1} parent=1 // pred_check_branch
      %690 = sbr.rel (0) target = $region17
    $region16: #{tpu_custom_call.1} parent=1 // pred_region
      %s692 = ssub.s32 128, 32
      %693 = vsyncadd [#allocation3], %s692
      %s694 = sshll.u32 [#allocation2], 4
      %s695 = int_to_ptr.vmem [resolvable:$true] %s694
      %700 = dma.vmem_to_hbm [thread:$0]  %s695, 32, %s3, [#allocation3], 32, 32, 2
    $region17: #{tpu_custom_call.1} parent=1 // pred_fallthru
      _
    // Predicated region
    $region18: #{tpu_custom_call.1} parent=1 // pred_check
      _
    $region19: #{tpu_custom_call.1} parent=1 // pred_check_branch
      %702 = sbr.rel (0) target = $region21
    $region20: #{tpu_custom_call.1} parent=1 // pred_region
      %703 = dma.done [#allocation3], 128
    $region21: #{tpu_custom_call.1} parent=1 // pred_fallthru
      _
    %704 = vsyncpa [#allocation3], 1

</llo_original>
